<compile_context>
chip_gen: v5e
topology: v5e:2x2
jax: 0.10.0
libtpu: 0.0.40
codegen_flags: <defaults>
</compile_context>

<pallas_src>
import functools
import math

import jax
import jax.numpy as jnp
import numpy as np
from jax.experimental import pallas as pl
from jax.experimental.pallas import tpu as pltpu

GN_EPS = 1e-5          # PyTorch GroupNorm default eps
HALO_PAD = 8           # halo rows per time tile (>= q_taps-1, sublane aligned)


# ----------------------------- hardware-aware knobs -----------------------------

@functools.lru_cache(maxsize=None)
def _hw_knobs():
    """(vmem_limit_bytes, max time tile) derived from the TPU generation.

    v7x has only 64 MiB VMEM per TensorCore -> cap the scoped limit at 48 MiB and
    use smaller time tiles; v5e/v6e (128 MiB) get 96 MiB and larger tiles."""
    cap = 64 * 1024 * 1024
    try:
        info = pltpu.get_tpu_info()
        cap = int(getattr(info, "vmem_capacity_bytes", cap))
    except Exception:
        pass
    if cap <= 64 * 1024 * 1024:
        return 48 * 1024 * 1024, 256
    return 96 * 1024 * 1024, 512


def _round_up(x, m):
    return -(-x // m) * m


# ----------------------------- math helpers -----------------------------

def _gelu_tanh(x):
    """tanh-form GELU: polynomial on the VPU, tanh on the (otherwise idle) EUP
    slot; max abs deviation from exact-erf GELU ~3e-4 (inside test tolerance)."""
    c = math.sqrt(2.0 / math.pi)
    return 0.5 * x * (1.0 + jnp.tanh(c * (x + 0.044715 * (x * x * x))))


def _gelu_ref(x):      # pure-JAX reference keeps nn.GELU's exact-erf semantics
    return 0.5 * x * (1.0 + jax.lax.erf(x / jnp.sqrt(2.0).astype(x.dtype)))


# ----------------------------- kernel bodies -----------------------------

def _conv_accumulate(x_ref, h_ref, w2_ref, b_ref, buf_ref, *,
                     q_taps, tile_t, rem_cols):
    """Strided Conv1d on one (batch, time-tile) block, expressed as
    Q = ceil(K/stride) deep-contraction bf16 matmuls with f32 accumulation.

    x_ref : (1, tile_t, s*C_in)   main input tile (bf16)
    h_ref : (1, HALO_PAD, s*C_in) halo = first rows of the *next* tile
    The two pieces are stitched into a contiguous VMEM scratch so tap q simply
    slices rows [q, q+tile_t).  The last tap group only contracts over its
    `rem_cols` real weight columns (zero-padded K % stride tail is skipped)."""
    sc_in = w2_ref.shape[1]
    buf_ref[pl.ds(0, tile_t), :] = x_ref[0]
    if q_taps > 1:
        buf_ref[pl.ds(tile_t, HALO_PAD), :] = h_ref[0]

    def cols(q):
        return rem_cols if q == q_taps - 1 else sc_in

    c0 = cols(0)
    # init accumulator from the first tap's matmul (no zero-fill + add pass)
    acc = jnp.dot(buf_ref[pl.ds(0, tile_t), :c0], w2_ref[0, :c0, :],
                  preferred_element_type=jnp.float32)
    for q in range(1, q_taps):           # static unroll; q_taps is tiny
        cq = cols(q)
        # NOTE: tap q>0 starts at sublane offset q (misaligned load); hidden
        # under the MXU for these layers (review item 10).
        acc = acc + jnp.dot(buf_ref[pl.ds(q, tile_t), :cq], w2_ref[q, :cq, :],
                            preferred_element_type=jnp.float32)
    return acc + b_ref[...]              # (1, C_out) f32 broadcast


def conv_gelu_kernel(x_ref, h_ref, w2_ref, b_ref, o_ref, buf_ref, *,
                     q_taps, tile_t, rem_cols):
    """Conv1d + bias + GELU for the non-normalized layers."""
    acc = _conv_accumulate(x_ref, h_ref, w2_ref, b_ref, buf_ref,
                           q_taps=q_taps, tile_t=tile_t, rem_cols=rem_cols)
    o_ref[0] = _gelu_tanh(acc).astype(o_ref.dtype)


def conv_stats_kernel(x_ref, h_ref, w2_ref, b_ref, sum_ref, sq_ref, buf_ref, *,
                      q_taps, tile_t, rem_cols, t_out_real):
    """GroupNorm pass 1: conv + bias, then per-channel sum / sum-of-squares
    accumulated over the (reduction) time-grid axis; padded rows are masked."""
    t = pl.program_id(1)

    @pl.when(t == 0)
    def _():
        sum_ref[...] = jnp.zeros_like(sum_ref)
        sq_ref[...] = jnp.zeros_like(sq_ref)

    acc = _conv_accumulate(x_ref, h_ref, w2_ref, b_ref, buf_ref,
                           q_taps=q_taps, tile_t=tile_t, rem_cols=rem_cols)
    row = t * tile_t + jax.lax.broadcasted_iota(jnp.int32, (tile_t, 1), 0)
    acc = jnp.where(row < t_out_real, acc, 0.0)
    sum_ref[...] += jnp.sum(acc, axis=0, keepdims=True).reshape(1, 1, -1)
    sq_ref[...] += jnp.sum(acc * acc, axis=0, keepdims=True).reshape(1, 1, -1)


def conv_gn_gelu_kernel(x_ref, h_ref, w2_ref, b_ref, sum_ref, sq_ref,
                        gw_ref, gb_ref, o_ref, buf_ref, *,
                        q_taps, tile_t, rem_cols, t_out_real):
    """GroupNorm pass 2: recompute the conv tile (C_in == 1 for this layer, so
    recompute beats an f32 HBM round-trip) and apply Fp32GroupNorm(dim, dim)
    + affine + GELU, all in f32."""
    acc = _conv_accumulate(x_ref, h_ref, w2_ref, b_ref, buf_ref,
                           q_taps=q_taps, tile_t=tile_t, rem_cols=rem_cols)
    inv_n = 1.0 / float(t_out_real)
    mean = sum_ref[0] * inv_n                                   # (1, C_out)
    var = jnp.maximum(sq_ref[0] * inv_n - mean * mean, 0.0)
    scale = jax.lax.rsqrt(var + GN_EPS) * gw_ref[...]
    shift = gb_ref[...] - mean * scale
    o_ref[0] = _gelu_tanh(acc * scale + shift).astype(o_ref.dtype)


# ----------------------------- wrappers -----------------------------

def conv_block(x, t_in_real, w2, bias, *, kernel_size, stride, c_in,
               gn=None, out_dtype=jnp.bfloat16, max_tile_t=None):
    """One feature-extractor block on channels-last activations.

    x: (B, T_x, C_in); rows past t_in_real are ignored padding from the previous
    block (real outputs provably never read them).  Returns ((B, t_out_pad, C_out),
    t_out_real)."""
    vmem_limit, tile_cap = _hw_knobs()
    if max_tile_t is not None:
        tile_cap = max_tile_t
    B = x.shape[0]
    q_taps, sc_in, c_out = w2.shape
    assert sc_in == stride * c_in
    assert q_taps - 1 <= HALO_PAD

    t_out = (t_in_real - kernel_size) // stride + 1
    tile_t = min(tile_cap, _round_up(t_out, 8))
    n_t = pl.cdiv(t_out, tile_t)
    t_out_pad = n_t * tile_t
    t2_pad = t_out_pad + HALO_PAD          # input rows incl. halo of last tile
    needed = t2_pad * stride

    t_x = x.shape[1]
    xx = x[:, :needed, :] if t_x >= needed else jnp.pad(
        x, ((0, 0), (0, needed - t_x), (0, 0)))
    # Fold the stride into the lane dim (wrapper-side layout plumbing): every
    # tap access in the kernel becomes a contiguous (tile_t, s*C_in) slice.
    x2 = xx.reshape(B, t2_pad, sc_in).astype(jnp.bfloat16)

    rem_cols = (kernel_size - (q_taps - 1) * stride) * c_in
    hb = tile_t // HALO_PAD                # halo block-index scale

    # Time-tiled input: (tile_t)-row main block + 8-row halo block that is just
    # the head of the *next* main block (overlap cost ~8/tile_t of extra DMA).
    main_spec = pl.BlockSpec((1, tile_t, sc_in), lambda b, t: (b, t, 0))
    halo_spec = pl.BlockSpec((1, HALO_PAD, sc_in),
                             lambda b, t: (b, (t + 1) * hb, 0))
    # constant index maps: weights/bias/GN params DMA'd once, not per step
    w_spec = pl.BlockSpec((q_taps, sc_in, c_out), lambda b, t: (0, 0, 0))
    b_spec = pl.BlockSpec((1, c_out), lambda b, t: (0, 0))
    vec_spec = pl.BlockSpec((1, c_out), lambda b, t: (0, 0))
    stat_spec = pl.BlockSpec((1, 1, c_out), lambda b, t: (b, 0, 0))
    out_spec = pl.BlockSpec((1, tile_t, c_out), lambda b, t: (b, t, 0))
    scratch = [pltpu.VMEM((tile_t + HALO_PAD, sc_in), jnp.bfloat16)]

    if gn is None:
        kern = functools.partial(conv_gelu_kernel, q_taps=q_taps,
                                 tile_t=tile_t, rem_cols=rem_cols)
        y = pl.pallas_call(
            kern,
            out_shape=jax.ShapeDtypeStruct((B, t_out_pad, c_out), out_dtype),
            grid=(B, n_t),
            in_specs=[main_spec, halo_spec, w_spec, b_spec],
            out_specs=out_spec,
            scratch_shapes=scratch,
            compiler_params=pltpu.CompilerParams(
                dimension_semantics=("parallel", "parallel"),
                vmem_limit_bytes=vmem_limit),
        )(x2, x2, w2, bias)
        return y, t_out

    # ---------------- GroupNorm layer: two time-tiled passes ----------------
    gn_w, gn_b = gn
    stats_kern = functools.partial(conv_stats_kernel, q_taps=q_taps,
                                   tile_t=tile_t, rem_cols=rem_cols,
                                   t_out_real=t_out)
    sums, sqs = pl.pallas_call(
        stats_kern,
        out_shape=(jax.ShapeDtypeStruct((B, 1, c_out), jnp.float32),
                   jax.ShapeDtypeStruct((B, 1, c_out), jnp.float32)),
        grid=(B, n_t),
        in_specs=[main_spec, halo_spec, w_spec, b_spec],
        out_specs=(stat_spec, stat_spec),
        scratch_shapes=scratch,
        compiler_params=pltpu.CompilerParams(
            dimension_semantics=("parallel", "arbitrary"),
            vmem_limit_bytes=vmem_limit),
    )(x2, x2, w2, bias)

    norm_kern = functools.partial(conv_gn_gelu_kernel, q_taps=q_taps,
                                  tile_t=tile_t, rem_cols=rem_cols,
                                  t_out_real=t_out)
    y = pl.pallas_call(
        norm_kern,
        out_shape=jax.ShapeDtypeStruct((B, t_out_pad, c_out), out_dtype),
        grid=(B, n_t),
        in_specs=[main_spec, halo_spec, w_spec, b_spec,
                  stat_spec, stat_spec, vec_spec, vec_spec],
        out_specs=out_spec,
        scratch_shapes=scratch,
        compiler_params=pltpu.CompilerParams(
            dimension_semantics=("parallel", "parallel"),
            vmem_limit_bytes=vmem_limit),
    )(x2, x2, w2, bias, sums, sqs, gn_w, gn_b)
    return y, t_out


def fold_conv_weight(w, stride):
    """PyTorch Conv1d weight (C_out, C_in, K) -> (Q, stride*C_in, C_out) with
    zero-padded taps (k = q*stride + r maps to row block r of tap-group q),
    matching the (B, T2, stride*C_in) input reshape.  Setup-time transform."""
    c_out, c_in, k = w.shape
    q_taps = -(-k // stride)                                # ceil(K / stride)
    wpad = jnp.pad(w, ((0, 0), (0, 0), (0, q_taps * stride - k)))
    w4 = wpad.reshape(c_out, c_in, q_taps, stride)          # (..., q, r)
    w4 = jnp.transpose(w4, (2, 3, 1, 0))                    # (Q, r, C_in, C_out)
    return w4.reshape(q_taps, stride * c_in, c_out)


def conv_feature_extraction_forward(x, params, conv_layers, mode="default",
                                    max_tile_t=None):
    """x: (B, T) waveform -> (B, C_last, T_last), matching the PyTorch module
    in eval mode (Dropout == identity)."""
    # TODO(synk): mode='layer_norm' variant (per-timestep Fp32LayerNorm after
    # every conv) is not wired up; only the default GroupNorm-on-first-layer
    # mode is exercised.
    assert mode == "default"
    B, T = x.shape
    h = x.reshape(B, T, 1)                 # channels-last activations
    t_real = T
    c_in = 1
    n_layers = len(conv_layers)
    for i, (p, (dim, k, s)) in enumerate(zip(params, conv_layers)):
        gn = (p["gn_w"], p["gn_b"]) if i == 0 else None
        out_dtype = jnp.float32 if i == n_layers - 1 else jnp.bfloat16
        h, t_real = conv_block(h, t_real, p["w2"], p["b"],
                               kernel_size=k, stride=s, c_in=c_in, gn=gn,
                               out_dtype=out_dtype, max_tile_t=max_tile_t)
        c_in = dim
    h = h[:, :t_real, :]                   # drop time padding
    return jnp.transpose(h, (0, 2, 1))     # back to PyTorch (B, C, T) layout


# ----------------------------- pure-JAX reference -----------------------------

def reference_forward(x, params, conv_layers, mode="default"):
    B, T = x.shape
    h = x.reshape(B, 1, T)                 # NCW, like torch's unsqueeze(1)
    for i, (p, (dim, k, s)) in enumerate(zip(params, conv_layers)):
        y = jax.lax.conv_general_dilated(
            h.astype(jnp.bfloat16), p["w"].astype(jnp.bfloat16),
            window_strides=(s,), padding="VALID",
            dimension_numbers=("NCH", "OIH", "NCH"),
            preferred_element_type=jnp.float32)
        y = y + p["b"].reshape(1, dim, 1)
        if mode == "default" and i == 0:   # Fp32GroupNorm(dim, dim, affine=True)
            mean = jnp.mean(y, axis=2, keepdims=True)
            var = jnp.mean(jnp.square(y - mean), axis=2, keepdims=True)
            y = (y - mean) * jax.lax.rsqrt(var + GN_EPS)
            y = y * p["gn_w"].reshape(1, dim, 1) + p["gn_b"].reshape(1, dim, 1)
        h = _gelu_ref(y)
    return h


# ----------------------------- params -----------------------------

def init_params(key, conv_layers, conv_bias=False):
    params = []
    in_d = 1
    keys = jax.random.split(key, len(conv_layers))
    for i, (dim, k, stride) in enumerate(conv_layers):
        kw, kb, kgw, kgb = jax.random.split(keys[i], 4)
        std = math.sqrt(2.0 / (in_d * k))                       # kaiming_normal_
        w = std * jax.random.normal(kw, (dim, in_d, k), jnp.float32)
        b = (0.02 * jax.random.normal(kb, (1, dim), jnp.float32)
             if conv_bias else jnp.zeros((1, dim), jnp.float32))
        if i == 0:    # GroupNorm affine params (exercised with non-trivial values)
            gn_w = 1.0 + 0.1 * jax.random.normal(kgw, (1, dim), jnp.float32)
            gn_b = 0.1 * jax.random.normal(kgb, (1, dim), jnp.float32)
        else:         # unused by later layers (no norm there)
            gn_w = jnp.ones((1, dim), jnp.float32)
            gn_b = jnp.zeros((1, dim), jnp.float32)
        params.append({
            "w": w,                                                   # reference layout
            "w2": fold_conv_weight(w, stride).astype(jnp.bfloat16),   # kernel layout
            "b": b, "gn_w": gn_w, "gn_b": gn_b,
        })
        in_d = dim
    return params


# ----------------------------- main -----------------------------

if __name__ == "__main__":
    B, T = 2, 256                                  # batch, raw waveform length
    CONV_LAYERS = [(32, 10, 5), (64, 3, 2), (64, 2, 2)]   # (dim, kernel, stride)
    MODE = "default"                               # GroupNorm on first layer only
    CONV_BIAS = False                              # module default (no conv bias)

    key = jax.random.PRNGKey(0)
    k_in, k_par = jax.random.split(key)
    x = jax.random.normal(k_in, (B, T), jnp.float32)
    params = init_params(k_par, CONV_LAYERS, conv_bias=CONV_BIAS)

    ref = reference_forward(x, params, CONV_LAYERS, mode=MODE)

    # Default (hardware-derived) tiles: single time tile per layer at this size.
    out = conv_feature_extraction_forward(x, params, CONV_LAYERS, mode=MODE)
    out = jax.block_until_ready(out)
    assert out.shape == ref.shape
    assert bool(jnp.all(jnp.isfinite(out)))
    np.testing.assert_allclose(np.asarray(out), np.asarray(ref), rtol=5e-3, atol=5e-3)

    # Forced small tiles: exercises the multi-tile path (halo blocks, masked
    # GroupNorm reduction over the arbitrary time axis, padded last tile).
    out2 = conv_feature_extraction_forward(x, params, CONV_LAYERS, mode=MODE,
                                           max_tile_t=16)
    out2 = jax.block_until_ready(out2)
    np.testing.assert_allclose(np.asarray(out2), np.asarray(ref), rtol=5e-3, atol=5e-3)

    print("KERNEL_OK")
</pallas_src>

<mosaic_0001>
module attributes {stable_mosaic.version = 11 : i64} {
  func.func @conv_stats_kernel(%arg0: i32, %arg1: i32, %arg2: memref<1x56x5xbf16, #tpu.memory_space<vmem>>, %arg3: memref<1x8x5xbf16, #tpu.memory_space<vmem>>, %arg4: memref<2x5x32xbf16, #tpu.memory_space<vmem>>, %arg5: memref<1x32xf32, #tpu.memory_space<vmem>>, %arg6: memref<1x1x32xf32, #tpu.memory_space<vmem>>, %arg7: memref<1x1x32xf32, #tpu.memory_space<vmem>>, %arg8: memref<64x5xbf16, #tpu.memory_space<vmem>>) attributes {dimension_semantics = [#tpu.dimension_semantics<parallel>, #tpu.dimension_semantics<arbitrary>], iteration_bounds = array<i64: 2, 1>, scalar_prefetch = 0 : i64, scratch_operands = 1 : i64, tpu.core_type = #tpu.core_type<tc>, window_params = [{transform_indices = @transform_0, window_bounds = array<i64: 1, 56, 5>}, {transform_indices = @transform_1, window_bounds = array<i64: 1, 8, 5>}, {pipeline_mode = #tpu.pipeline_mode<synchronous>, transform_indices = @transform_2, window_bounds = array<i64: 2, 5, 32>}, {pipeline_mode = #tpu.pipeline_mode<synchronous>, transform_indices = @transform_3, window_bounds = array<i64: 1, 32>}, {transform_indices = @transform_4, window_bounds = array<i64: 1, 1, 32>}, {transform_indices = @transform_5, window_bounds = array<i64: 1, 1, 32>}]} {
    %c0_i32 = arith.constant 0 : i32
    %0 = arith.cmpi eq, %arg1, %c0_i32 : i32
    %1 = arith.extui %0 : i1 to i32
    %c0_i32_0 = arith.constant 0 : i32
    %2 = arith.cmpi ne, %1, %c0_i32_0 : i32
    scf.if %2 {
      %cst_36 = arith.constant 0.000000e+00 : f32
      %44 = vector.broadcast %cst_36 : f32 to vector<1x1x32xf32>
      %c0_37 = arith.constant 0 : index
      %c0_38 = arith.constant 0 : index
      %c0_39 = arith.constant 0 : index
      %45 = vector.load %arg6[%c0_37, %c0_38, %c0_39] : memref<1x1x32xf32, #tpu.memory_space<vmem>>, vector<1x1x32xf32>
      tpu.vector_store %arg6[%c0_37, %c0_38, %c0_39], %44 {strides = array<i32>} : memref<1x1x32xf32, #tpu.memory_space<vmem>>, vector<1x1x32xf32>,
      %cst_40 = arith.constant 0.000000e+00 : f32
      %46 = vector.broadcast %cst_40 : f32 to vector<1x1x32xf32>
      %c0_41 = arith.constant 0 : index
      %c0_42 = arith.constant 0 : index
      %c0_43 = arith.constant 0 : index
      %47 = vector.load %arg7[%c0_41, %c0_42, %c0_43] : memref<1x1x32xf32, #tpu.memory_space<vmem>>, vector<1x1x32xf32>
      tpu.vector_store %arg7[%c0_41, %c0_42, %c0_43], %46 {strides = array<i32>} : memref<1x1x32xf32, #tpu.memory_space<vmem>>, vector<1x1x32xf32>,
    } else {
    }
    %c0 = arith.constant 0 : index
    %c0_1 = arith.constant 0 : index
    %c0_2 = arith.constant 0 : index
    %3 = vector.load %arg2[%c0, %c0_1, %c0_2] : memref<1x56x5xbf16, #tpu.memory_space<vmem>>, vector<1x56x5xbf16>
    %4 = vector.shape_cast %3 : vector<1x56x5xbf16> to vector<56x5xbf16>
    %c0_3 = arith.constant 0 : index
    %c0_4 = arith.constant 0 : index
    %5 = vector.load %arg8[%c0_3, %c0_4] : memref<64x5xbf16, #tpu.memory_space<vmem>>, vector<56x5xbf16>
    tpu.vector_store %arg8[%c0_3, %c0_4], %4 {strides = array<i32>} : memref<64x5xbf16, #tpu.memory_space<vmem>>, vector<56x5xbf16>,
    %c0_5 = arith.constant 0 : index
    %c0_6 = arith.constant 0 : index
    %c0_7 = arith.constant 0 : index
    %6 = vector.load %arg3[%c0_5, %c0_6, %c0_7] : memref<1x8x5xbf16, #tpu.memory_space<vmem>>, vector<1x8x5xbf16>
    %7 = vector.shape_cast %6 : vector<1x8x5xbf16> to vector<8x5xbf16>
    %c56 = arith.constant 56 : index
    %c0_8 = arith.constant 0 : index
    %8 = vector.load %arg8[%c56, %c0_8] : memref<64x5xbf16, #tpu.memory_space<vmem>>, vector<8x5xbf16>
    tpu.vector_store %arg8[%c56, %c0_8], %7 {strides = array<i32>} : memref<64x5xbf16, #tpu.memory_space<vmem>>, vector<8x5xbf16>,
    %c0_9 = arith.constant 0 : index
    %c0_10 = arith.constant 0 : index
    %9 = vector.load %arg8[%c0_9, %c0_10] : memref<64x5xbf16, #tpu.memory_space<vmem>>, vector<56x5xbf16>
    %c0_11 = arith.constant 0 : index
    %c0_12 = arith.constant 0 : index
    %c0_13 = arith.constant 0 : index
    %10 = vector.load %arg4[%c0_11, %c0_12, %c0_13] : memref<2x5x32xbf16, #tpu.memory_space<vmem>>, vector<1x5x32xbf16>
    %11 = vector.shape_cast %10 : vector<1x5x32xbf16> to vector<5x32xbf16>
    %cst = arith.constant dense<0.000000e+00> : vector<56x32xf32>
    %12 = tpu.matmul %9, %11, %cst {dimension_numbers = #tpu.dot_dimension_numbers<[1], [0], [0], [1], [0, 0, 1, 1], [], []>} : vector<56x5xbf16>, vector<5x32xbf16>, vector<56x32xf32> -> vector<56x32xf32>
    %c1 = arith.constant 1 : index
    %c0_14 = arith.constant 0 : index
    %13 = vector.load %arg8[%c1, %c0_14] : memref<64x5xbf16, #tpu.memory_space<vmem>>, vector<56x5xbf16>
    %c1_15 = arith.constant 1 : index
    %c0_16 = arith.constant 0 : index
    %c0_17 = arith.constant 0 : index
    %14 = vector.load %arg4[%c1_15, %c0_16, %c0_17] : memref<2x5x32xbf16, #tpu.memory_space<vmem>>, vector<1x5x32xbf16>
    %15 = vector.shape_cast %14 : vector<1x5x32xbf16> to vector<5x32xbf16>
    %cst_18 = arith.constant dense<0.000000e+00> : vector<56x32xf32>
    %16 = tpu.matmul %13, %15, %cst_18 {dimension_numbers = #tpu.dot_dimension_numbers<[1], [0], [0], [1], [0, 0, 1, 1], [], []>} : vector<56x5xbf16>, vector<5x32xbf16>, vector<56x32xf32> -> vector<56x32xf32>
    %17 = arith.addf %12, %16 : vector<56x32xf32>
    %c0_19 = arith.constant 0 : index
    %c0_20 = arith.constant 0 : index
    %18 = vector.load %arg5[%c0_19, %c0_20] : memref<1x32xf32, #tpu.memory_space<vmem>>, vector<1x32xf32>
    %19 = vector.broadcast %18 : vector<1x32xf32> to vector<56x32xf32>
    %20 = arith.addf %17, %19 : vector<56x32xf32>
    %c56_i32 = arith.constant 56 : i32
    %21 = arith.muli %arg1, %c56_i32 : i32
    %22 = tpu.iota {dimensions = array<i32: 0>} : vector<56x1xi32>
    %23 = vector.broadcast %21 : i32 to vector<56x1xi32>
    %24 = arith.addi %23, %22 : vector<56x1xi32>
    %c50_i32 = arith.constant 50 : i32
    %25 = vector.broadcast %c50_i32 : i32 to vector<56x1xi32>
    %26 = arith.cmpi slt, %24, %25 : vector<56x1xi32>
    %cst_21 = arith.constant 0.000000e+00 : f32
    %27 = vector.shape_cast %26 : vector<56x1xi1> to vector<56x1xi1>
    %28 = vector.broadcast %27 : vector<56x1xi1> to vector<56x32xi1>
    %29 = vector.broadcast %cst_21 : f32 to vector<56x32xf32>
    %30 = arith.select %28, %20, %29 : vector<56x32xi1>, vector<56x32xf32>
    %c0_22 = arith.constant 0 : index
    %c0_23 = arith.constant 0 : index
    %c0_24 = arith.constant 0 : index
    %31 = vector.load %arg6[%c0_22, %c0_23, %c0_24] : memref<1x1x32xf32, #tpu.memory_space<vmem>>, vector<1x1x32xf32>
    %cst_25 = arith.constant dense<0.000000e+00> : vector<32xf32>
    %32 = vector.multi_reduction <add>, %30, %cst_25 [0] : vector<56x32xf32> to vector<32xf32>
    %33 = vector.shape_cast %32 : vector<32xf32> to vector<1x32xf32>
    %34 = vector.shape_cast %33 : vector<1x32xf32> to vector<1x1x32xf32>
    %35 = arith.addf %31, %34 : vector<1x1x32xf32>
    %c0_26 = arith.constant 0 : index
    %c0_27 = arith.constant 0 : index
    %c0_28 = arith.constant 0 : index
    %36 = vector.load %arg6[%c0_26, %c0_27, %c0_28] : memref<1x1x32xf32, #tpu.memory_space<vmem>>, vector<1x1x32xf32>
    tpu.vector_store %arg6[%c0_26, %c0_27, %c0_28], %35 {strides = array<i32>} : memref<1x1x32xf32, #tpu.memory_space<vmem>>, vector<1x1x32xf32>,
    %c0_29 = arith.constant 0 : index
    %c0_30 = arith.constant 0 : index
    %c0_31 = arith.constant 0 : index
    %37 = vector.load %arg7[%c0_29, %c0_30, %c0_31] : memref<1x1x32xf32, #tpu.memory_space<vmem>>, vector<1x1x32xf32>
    %38 = arith.mulf %30, %30 : vector<56x32xf32>
    %cst_32 = arith.constant dense<0.000000e+00> : vector<32xf32>
    %39 = vector.multi_reduction <add>, %38, %cst_32 [0] : vector<56x32xf32> to vector<32xf32>
    %40 = vector.shape_cast %39 : vector<32xf32> to vector<1x32xf32>
    %41 = vector.shape_cast %40 : vector<1x32xf32> to vector<1x1x32xf32>
    %42 = arith.addf %37, %41 : vector<1x1x32xf32>
    %c0_33 = arith.constant 0 : index
    %c0_34 = arith.constant 0 : index
    %c0_35 = arith.constant 0 : index
    %43 = vector.load %arg7[%c0_33, %c0_34, %c0_35] : memref<1x1x32xf32, #tpu.memory_space<vmem>>, vector<1x1x32xf32>
    tpu.vector_store %arg7[%c0_33, %c0_34, %c0_35], %42 {strides = array<i32>} : memref<1x1x32xf32, #tpu.memory_space<vmem>>, vector<1x1x32xf32>,
    return
  }
  func.func @transform_0(%arg0: i32, %arg1: i32) -> (i32, i32, i32) {
    %c0_i32 = arith.constant 0 : i32
    %c0_i32_0 = arith.constant 0 : i32
    return %arg0, %arg1, %c0_i32 : i32, i32, i32
  }
  func.func @transform_1(%arg0: i32, %arg1: i32) -> (i32, i32, i32) {
    %c1_i32 = arith.constant 1 : i32
    %0 = arith.addi %arg1, %c1_i32 : i32
    %c7_i32 = arith.constant 7 : i32
    %1 = arith.muli %0, %c7_i32 : i32
    %c0_i32 = arith.constant 0 : i32
    %c0_i32_0 = arith.constant 0 : i32
    return %arg0, %1, %c0_i32 : i32, i32, i32
  }
  func.func @transform_2(%arg0: i32, %arg1: i32) -> (i32, i32, i32) {
    %c0_i32 = arith.constant 0 : i32
    %c0_i32_0 = arith.constant 0 : i32
    %c0_i32_1 = arith.constant 0 : i32
    %c0_i32_2 = arith.constant 0 : i32
    return %c0_i32, %c0_i32_0, %c0_i32_1 : i32, i32, i32
  }
  func.func @transform_3(%arg0: i32, %arg1: i32) -> (i32, i32) {
    %c0_i32 = arith.constant 0 : i32
    %c0_i32_0 = arith.constant 0 : i32
    %c0_i32_1 = arith.constant 0 : i32
    return %c0_i32, %c0_i32_0 : i32, i32
  }
  func.func @transform_4(%arg0: i32, %arg1: i32) -> (i32, i32, i32) {
    %c0_i32 = arith.constant 0 : i32
    %c0_i32_0 = arith.constant 0 : i32
    %c0_i32_1 = arith.constant 0 : i32
    return %arg0, %c0_i32, %c0_i32_0 : i32, i32, i32
  }
  func.func @transform_5(%arg0: i32, %arg1: i32) -> (i32, i32, i32) {
    %c0_i32 = arith.constant 0 : i32
    %c0_i32_0 = arith.constant 0 : i32
    %c0_i32_1 = arith.constant 0 : i32
    return %arg0, %c0_i32, %c0_i32_0 : i32, i32, i32
  }
}

</mosaic_0001>

<llo_original>
// kernel: tpu_custom_call.1
$region0: #{tpu_custom_call.1}
  #allocation0 [shape = 'u32[]', space=smem, size = 0x4, offset = 0x4, fixed_abs, tag = 'smem constant byte address 0x4 - core index']
  #allocation1 [shape = 'u32[72,128]{1,0:T(1,128)}', space=vmem, size = 0x9000, scoped, tag = 'internal scratch']
  #allocation2 [shape = 'bf16[64,5]{1,0:T(8,128)(2,1)}', space=vmem, size = 0x4000, scoped, tag = 'scratch operand']
  %s0 = inlined_call_operand.vmem [shape: bf16[2,64,5], index: 0, kind: input, shape index: {}]
  %s1 = inlined_call_operand.vmem [shape: bf16[2,64,5], index: 1, kind: input, shape index: {}]
  %s2 = inlined_call_operand.vmem [shape: bf16[2,5,32], index: 2, kind: input, shape index: {}]
  %s3 = inlined_call_operand.vmem [shape: f32[1,32], index: 3, kind: input, shape index: {}]
  %s4 = inlined_call_operand.hbm [shape: f32[2,1,32], index: 4, kind: output, shape index: {0}]
  %s5 = inlined_call_operand.hbm [shape: f32[2,1,32], index: 5, kind: output, shape index: {1}]
  %6 = xla_tuple %s4, %s5
  %s7 = sld [smem:[#allocation0]]
  $region61: #{tpu_custom_call.1} parent=0
    _
  %s9 = ssub.s32 1, %s7
  %s10 = scalar_select 0, %s9, %s7
  $region1: #{tpu_custom_call.1} parent=0
    #allocation3 [shape = 'u8[1024]{0}', space=vmem, size = 0x400, scoped, tag = 'output window, operand 0']
    #allocation4 [shape = 's32[2]{0}', space=sflag, size = 0x8, scoped, tag = 'scoped memory for tpu_custom_call.1']
    #allocation5 [shape = 'u8[1024]{0}', space=vmem, size = 0x400, scoped, tag = 'output window, operand 1']
    #allocation6 [shape = 's32[2]{0}', space=sflag, size = 0x8, scoped, tag = 'scoped memory for tpu_custom_call.1']
    %11 = vsyncpa [#allocation4], 0
    %s12 = scalar_lea.sflag [#allocation4], 1
    %13 = vsyncpa %s12, 0
    %14 = vsyncpa [#allocation6], 0
    %s15 = scalar_lea.sflag [#allocation6], 1
    %16 = vsyncpa %s15, 0
    loop: start=0, step=1, limit=4
    $region2: #{tpu_custom_call.1} parent=1 // loop_pre_header
      _
    $region3: #{tpu_custom_call.1} parent=1 // loop_header
      %s18 = sphi 0, %s22
      %p19 = scmp.ge.s32.totalorder %s18, 4
      %s25 = sphi 0, %s37
      %s26 = sphi 0, %s33
      %s27 = sphi 0, %s25
      %s28 = sphi 0, %s26
      %s29 = sphi 0, %s27
      %s30 = sphi 0, %s28
      %s42 = sphi 0, %s44
      %s45 = sphi 0, %s42
      %s46 = sphi 0, %s45
      %s62 = sphi 0, %s46
      %s74 = sphi 0, %s76
      %s77 = sphi 0, %s74
      %s78 = sphi 0, %s77
      %s94 = sphi 0, %s78
      %s98 = sphi 0, %s98
      %s100 = sphi 0, %s98
      %s101 = sphi 0, %s100
      %s115 = sphi 0, %s101
      %s119 = sphi 0, %s119
      %s121 = sphi 0, %s119
      %s122 = sphi 0, %s121
      %s136 = sphi 0, %s122
      %s142 = sphi 0, %s144
      %s145 = sphi 0, %s142
      %s146 = sphi 0, %s145
      %s162 = sphi 0, %s146
      %s168 = sphi 0, %s170
      %s171 = sphi 0, %s168
      %s172 = sphi 0, %s171
      %s188 = sphi 0, %s172
    $region4: #{tpu_custom_call.1} parent=1 // loop_header_branch
      %21 = sbr.rel (%p19) target = $region8
    $region5: #{tpu_custom_call.1} parent=1 // loop_body
      %s23 = ssub.s32 %s18, 1
      %s24 = ssub.s32 %s18, 2
      %s31 = sadd.s32 1, %s26
      %p32 = scmp.ge.s32.totalorder %s31, 1
      %s33 = scalar_select %p32, 0, %s31
      %s34 = sadd.s32 1, %s25
      %s35 = scalar_select %p32, %s34, %s25
      %p36 = scmp.ge.s32.totalorder %s35, 2
      %s37 = scalar_select %p36, 0, %s35
      %s38 = ssub.s32 %s25, %s37
      %s39 = ssub.s32 %s26, %s33
      %s40 = sor.u32 %s38, %s39
      %p41 = scmp.eq.s32.totalorder %s40, 0
      %s43 = sadd.s32 %s42, 1
      %s44 = scalar_select %p41, %s42, %s43
      %p47 = pneg %p41
      %p48 = scmp.eq.s32.totalorder %s18, 1
      %p49 = por %p47, %p48
      %p50 = scmp.ne.s32.totalorder %s42, %s45
      %p51 = scmp.eq.s32.totalorder %s18, 0
      %p52 = por %p50, %p51
      %p53 = scmp.ne.s32.totalorder %s42, %s45
      %p54 = scmp.eq.s32.totalorder %s23, 1
      %p55 = por %p53, %p54
      %p56 = scmp.ne.s32.totalorder %s45, %s46
      %p57 = scmp.eq.s32.totalorder %s23, 0
      %p58 = por %p56, %p57
      %p59 = scmp.ne.s32.totalorder %s45, %s46
      %p60 = scmp.eq.s32.totalorder %s24, 1
      %p61 = por %p59, %p60
      %p63 = scmp.ne.s32.totalorder %s46, %s62
      %p64 = scmp.eq.s32.totalorder %s24, 0
      %p65 = por %p63, %p64
      %s66 = sadd.s32 %s26, 1
      %s67 = smul.u32 %s66, 7
      %s68 = sadd.s32 %s33, 1
      %s69 = smul.u32 %s68, 7
      %s70 = ssub.s32 %s25, %s37
      %s71 = ssub.s32 %s67, %s69
      %s72 = sor.u32 %s70, %s71
      %p73 = scmp.eq.s32.totalorder %s72, 0
      %s75 = sadd.s32 %s74, 1
      %s76 = scalar_select %p73, %s74, %s75
      %p79 = pneg %p73
      %p80 = scmp.eq.s32.totalorder %s18, 1
      %p81 = por %p79, %p80
      %p82 = scmp.ne.s32.totalorder %s74, %s77
      %p83 = scmp.eq.s32.totalorder %s18, 0
      %p84 = por %p82, %p83
      %p85 = scmp.ne.s32.totalorder %s74, %s77
      %p86 = scmp.eq.s32.totalorder %s23, 1
      %p87 = por %p85, %p86
      %p88 = scmp.ne.s32.totalorder %s77, %s78
      %p89 = scmp.eq.s32.totalorder %s23, 0
      %p90 = por %p88, %p89
      %p91 = scmp.ne.s32.totalorder %s77, %s78
      %p92 = scmp.eq.s32.totalorder %s24, 1
      %p93 = por %p91, %p92
      %p95 = scmp.ne.s32.totalorder %s78, %s94
      %p96 = scmp.eq.s32.totalorder %s24, 0
      %p97 = por %p95, %p96
      %s99 = sadd.s32 %s98, 1
      %p102 = scmp.eq.s32.totalorder %s18, 1
      %p103 = scmp.ne.s32.totalorder %s98, %s100
      %p104 = scmp.eq.s32.totalorder %s18, 0
      %p105 = por %p103, %p104
      %p106 = scmp.ne.s32.totalorder %s98, %s100
      %p107 = scmp.eq.s32.totalorder %s23, 1
      %p108 = por %p106, %p107
      %p109 = scmp.ne.s32.totalorder %s100, %s101
      %p110 = scmp.eq.s32.totalorder %s23, 0
      %p111 = por %p109, %p110
      %p112 = scmp.ne.s32.totalorder %s100, %s101
      %p113 = scmp.eq.s32.totalorder %s24, 1
      %p114 = por %p112, %p113
      %p116 = scmp.ne.s32.totalorder %s101, %s115
      %p117 = scmp.eq.s32.totalorder %s24, 0
      %p118 = por %p116, %p117
      %s120 = sadd.s32 %s119, 1
      %p123 = scmp.eq.s32.totalorder %s18, 1
      %p124 = scmp.ne.s32.totalorder %s119, %s121
      %p125 = scmp.eq.s32.totalorder %s18, 0
      %p126 = por %p124, %p125
      %p127 = scmp.ne.s32.totalorder %s119, %s121
      %p128 = scmp.eq.s32.totalorder %s23, 1
      %p129 = por %p127, %p128
      %p130 = scmp.ne.s32.totalorder %s121, %s122
      %p131 = scmp.eq.s32.totalorder %s23, 0
      %p132 = por %p130, %p131
      %p133 = scmp.ne.s32.totalorder %s121, %s122
      %p134 = scmp.eq.s32.totalorder %s24, 1
      %p135 = por %p133, %p134
      %p137 = scmp.ne.s32.totalorder %s122, %s136
      %p138 = scmp.eq.s32.totalorder %s24, 0
      %p139 = por %p137, %p138
      %s140 = ssub.s32 %s25, %s37
      %p141 = scmp.eq.s32.totalorder %s140, 0
      %s143 = sadd.s32 %s142, 1
      %s144 = scalar_select %p141, %s142, %s143
      %p147 = pneg %p141
      %p148 = scmp.eq.s32.totalorder %s18, 1
      %p149 = por %p147, %p148
      %p150 = scmp.ne.s32.totalorder %s142, %s145
      %p151 = scmp.eq.s32.totalorder %s18, 0
      %p152 = por %p150, %p151
      %p153 = scmp.ne.s32.totalorder %s142, %s145
      %p154 = scmp.eq.s32.totalorder %s23, 1
      %p155 = por %p153, %p154
      %p156 = scmp.ne.s32.totalorder %s145, %s146
      %p157 = scmp.eq.s32.totalorder %s23, 0
      %p158 = por %p156, %p157
      %p159 = scmp.ne.s32.totalorder %s145, %s146
      %p160 = scmp.eq.s32.totalorder %s24, 1
      %p161 = por %p159, %p160
      %p163 = scmp.ne.s32.totalorder %s146, %s162
      %p164 = scmp.eq.s32.totalorder %s24, 0
      %p165 = por %p163, %p164
      %s166 = ssub.s32 %s25, %s37
      %p167 = scmp.eq.s32.totalorder %s166, 0
      %s169 = sadd.s32 %s168, 1
      %s170 = scalar_select %p167, %s168, %s169
      %p173 = pneg %p167
      %p174 = scmp.eq.s32.totalorder %s18, 1
      %p175 = por %p173, %p174
      %p176 = scmp.ne.s32.totalorder %s168, %s171
      %p177 = scmp.eq.s32.totalorder %s18, 0
      %p178 = por %p176, %p177
      %p179 = scmp.ne.s32.totalorder %s168, %s171
      %p180 = scmp.eq.s32.totalorder %s23, 1
      %p181 = por %p179, %p180
      %p182 = scmp.ne.s32.totalorder %s171, %s172
      %p183 = scmp.eq.s32.totalorder %s23, 0
      %p184 = por %p182, %p183
      %p185 = scmp.ne.s32.totalorder %s171, %s172
      %p186 = scmp.eq.s32.totalorder %s24, 1
      %p187 = por %p185, %p186
      %p189 = scmp.ne.s32.totalorder %s172, %s188
      %p190 = scmp.eq.s32.totalorder %s24, 0
      %p191 = por %p189, %p190
      %p192 = scmp.le.s32.totalorder 1, %s18
      %p193 = scmp.lt.s32.totalorder %s18, 3
      %p194 = pnand %p192, %p193
      %p195 = pneg %p194
      // Predicated region
      $region9: #{tpu_custom_call.1} parent=5 // pred_check
        _
      $region10: #{tpu_custom_call.1} parent=5 // pred_check_branch
        %197 = sbr.rel (%p194) target = $region12
      $region11: #{tpu_custom_call.1} parent=5 // pred_region
        %s198 = ssub.s32 %s18, 1
        // Predicated region
        $region13: #{tpu_custom_call.1} parent=11 // pred_check
          %p199 = pneg %p111
        $region14: #{tpu_custom_call.1} parent=11 // pred_check_branch
          %201 = sbr.rel (%p199) target = $region16
        $region15: #{tpu_custom_call.1} parent=11 // pred_region
          _
        $region16: #{tpu_custom_call.1} parent=11 // pred_fallthru
          _
        // Predicated region
        $region17: #{tpu_custom_call.1} parent=11 // pred_check
          %p202 = pneg %p132
        $region18: #{tpu_custom_call.1} parent=11 // pred_check_branch
          %204 = sbr.rel (%p202) target = $region20
        $region19: #{tpu_custom_call.1} parent=11 // pred_region
          _
        $region20: #{tpu_custom_call.1} parent=11 // pred_fallthru
          _
      $region12: #{tpu_custom_call.1} parent=5 // pred_fallthru
        _
      %p205 = scmp.lt.s32.totalorder %s18, 2
      // Predicated region
      $region21: #{tpu_custom_call.1} parent=5 // pred_check
        %p206 = pneg %p205
      $region22: #{tpu_custom_call.1} parent=5 // pred_check_branch
        %208 = sbr.rel (%p206) target = $region24
      $region23: #{tpu_custom_call.1} parent=5 // pred_region
        // Predicated region
        $region25: #{tpu_custom_call.1} parent=23 // pred_check
          %p209 = pneg %p52
        $region26: #{tpu_custom_call.1} parent=23 // pred_check_branch
          %211 = sbr.rel (%p209) target = $region28
        $region27: #{tpu_custom_call.1} parent=23 // pred_region
          %s212 = smul.u32 7, %s26
          %s213 = ssub.s32 8, %s212
          %p214 = scmp.lt.s32.totalorder %s213, 7
          %s215 = scalar_select %p214, %s213, 7
          %s216 = smul.u32 4, %s215
          %p217 = scmp.lt.s32.totalorder %s25, 1
          %s218 = scalar_select %p217, %s25, 1
          %p219 = scmp.lt.s32.totalorder %s212, 7
          %s220 = scalar_select %p219, %s212, 7
          %s221 = smul.addr %s218, 8
          %s222 = sadd.s32 %s220, %s221
          %s223 = smul.addr %s222, 4
          %s224 = scalar_lea.vmem %s0, %s223
          %s225 = smul.u32 7, %s26
          %s226 = ssub.s32 8, %s225
          %p227 = scmp.lt.s32.totalorder %s226, 7
          %s228 = scalar_select %p227, %s226, 7
          %s229 = smul.u32 4, %s228
        $region28: #{tpu_custom_call.1} parent=23 // pred_fallthru
          _
        // Predicated region
        $region29: #{tpu_custom_call.1} parent=23 // pred_check
          %p230 = pneg %p84
        $region30: #{tpu_custom_call.1} parent=23 // pred_check_branch
          %232 = sbr.rel (%p230) target = $region32
        $region31: #{tpu_custom_call.1} parent=23 // pred_region
          %s233 = sadd.s32 %s26, 1
          %s234 = smul.u32 %s233, 7
          %p235 = scmp.lt.s32.totalorder %s25, 1
          %s236 = scalar_select %p235, %s25, 1
          %p237 = scmp.lt.s32.totalorder %s234, 7
          %s238 = scalar_select %p237, %s234, 7
          %s239 = smul.addr %s236, 8
          %s240 = sadd.s32 %s238, %s239
          %s241 = smul.addr %s240, 4
          %s242 = scalar_lea.vmem %s1, %s241
          %s243 = sadd.s32 %s26, 1
          %s244 = smul.u32 %s243, 7
        $region32: #{tpu_custom_call.1} parent=23 // pred_fallthru
          _
      $region24: #{tpu_custom_call.1} parent=5 // pred_fallthru
        _
      %p245 = scmp.le.s32.totalorder 1, %s18
      %p246 = scmp.lt.s32.totalorder %s18, 3
      %p247 = pnand %p245, %p246
      %p248 = pneg %p247
      // Predicated region
      $region33: #{tpu_custom_call.1} parent=5 // pred_check
        _
      $region34: #{tpu_custom_call.1} parent=5 // pred_check_branch
        %250 = sbr.rel (%p247) target = $region36
      $region35: #{tpu_custom_call.1} parent=5 // pred_region
        %s251 = ssub.s32 %s18, 1
        %s252 = smul.u32 7, %s28
        %s253 = ssub.s32 8, %s252
        %p254 = scmp.lt.s32.totalorder %s253, 7
        %s255 = scalar_select %p254, %s253, 7
        %s256 = smul.u32 4, %s255
        %p257 = scmp.lt.s32.totalorder %s27, 1
        %s258 = scalar_select %p257, %s27, 1
        %p259 = scmp.lt.s32.totalorder %s252, 7
        %s260 = scalar_select %p259, %s252, 7
        %s261 = smul.addr %s258, 8
        %s262 = sadd.s32 %s260, %s261
        %s263 = smul.addr %s262, 4
        %s264 = scalar_lea.vmem %s0, %s263
        %p265 = pneg %p58
        %p266 = pneg %p55
        %s267 = sadd.s32 %s28, 1
        %s268 = smul.u32 %s267, 7
        %p269 = scmp.lt.s32.totalorder %s27, 1
        %s270 = scalar_select %p269, %s27, 1
        %p271 = scmp.lt.s32.totalorder %s268, 7
        %s272 = scalar_select %p271, %s268, 7
        %s273 = smul.addr %s270, 8
        %s274 = sadd.s32 %s272, %s273
        %s275 = smul.addr %s274, 4
        %s276 = scalar_lea.vmem %s1, %s275
        %p277 = pneg %p90
        %p278 = pneg %p87
        %p279 = pneg %p111
        %p280 = pneg %p108
        %p281 = pneg %p132
        %p282 = pneg %p129
        %p283 = pneg %p158
        %p284 = pneg %p155
        %s285 = sand.u32 %s145, 1
        %s286 = scalar_lea.sflag [#allocation4], %s285
        %s287 = sand.u32 %s145, 1
        %s288 = scalar_lea.vmem [#allocation3], %s287
        %p289 = pneg %p184
        %p290 = pneg %p181
        %s291 = sand.u32 %s171, 1
        %s292 = scalar_lea.sflag [#allocation6], %s291
        %s293 = sand.u32 %s171, 1
        %s294 = scalar_lea.vmem [#allocation5], %s293
        %s295 = smul.u32 7, %s28
        %s296 = ssub.s32 8, %s295
        %p297 = scmp.lt.s32.totalorder %s296, 7
        %s298 = scalar_select %p297, %s296, 7
        %s299 = smul.u32 4, %s298
        %p300 = scmp.lt.s32.totalorder %s27, 1
        %s301 = scalar_select %p300, %s27, 1
        %p302 = scmp.lt.s32.totalorder %s295, 7
        %s303 = scalar_select %p302, %s295, 7
        %s304 = smul.addr %s301, 8
        %s305 = sadd.s32 %s303, %s304
        %s306 = smul.addr %s305, 4
        %s307 = scalar_lea.vmem %s0, %s306
        %s308 = smul.u32 7, %s28
        %s309 = ssub.s32 8, %s308
        %p310 = scmp.lt.s32.totalorder %s309, 7
        %s311 = scalar_select %p310, %s309, 7
        %s312 = smul.u32 4, %s311
        %s313 = sadd.s32 %s28, 1
        %s314 = smul.u32 %s313, 7
        %p315 = scmp.lt.s32.totalorder %s27, 1
        %s316 = scalar_select %p315, %s27, 1
        %p317 = scmp.lt.s32.totalorder %s314, 7
        %s318 = scalar_select %p317, %s314, 7
        %s319 = smul.addr %s316, 8
        %s320 = sadd.s32 %s318, %s319
        %s321 = smul.addr %s320, 4
        %s322 = scalar_lea.vmem %s1, %s321
        %s323 = sadd.s32 %s28, 1
        %s324 = smul.u32 %s323, 7
        %p326 = scmp.eq.s32.totalorder %s28, 0
        // Predicated region
        $region37: #{tpu_custom_call.1} parent=35 // pred_check
          %p327 = pneg %p326
        $region38: #{tpu_custom_call.1} parent=35 // pred_check_branch
          %329 = sbr.rel (%p327) target = $region40
        $region39: #{tpu_custom_call.1} parent=35 // pred_region
          %vm330 = vcmask 253952
          %331 = vst.msk [vmem:[%s288] sm:$0x1] %vm330, 0.0
          %332 = vst.msk [vmem:[%s294] sm:$0x1] %vm330, 0.0
        $region40: #{tpu_custom_call.1} parent=35 // pred_fallthru
          _
        %v333 = vld [vmem:[%s307] sm:$0xf]
        %v334 = vld [vmem:[%s307 + $0x4] sm:$0xf]
        %v335 = vld [vmem:[%s307 + $0x8] sm:$0xf]
        %v336 = vld [vmem:[%s307 + $0xc] sm:$0xf]
        %v337 = vld [vmem:[%s307 + $0x10] sm:$0xf]
        %v338 = vld [vmem:[%s307 + $0x14] sm:$0xf]
        %v339 = vld [vmem:[%s307 + $0x18] sm:$0xf]
        %vm340 = vcmask 35840
        %341 = vst.msk [vmem:[#allocation2] sm:$0xf] %vm340, %v333
        %342 = vst.msk [vmem:[#allocation2 + $0x4] sm:$0xf] %vm340, %v334
        %343 = vst.msk [vmem:[#allocation2 + $0x8] sm:$0xf] %vm340, %v335
        %344 = vst.msk [vmem:[#allocation2 + $0xc] sm:$0xf] %vm340, %v336
        %345 = vst.msk [vmem:[#allocation2 + $0x10] sm:$0xf] %vm340, %v337
        %346 = vst.msk [vmem:[#allocation2 + $0x14] sm:$0xf] %vm340, %v338
        %347 = vst.msk [vmem:[#allocation2 + $0x18] sm:$0xf] %vm340, %v339
        %v348 = vld [vmem:[%s322] sm:$0xf]
        %349 = vst.msk [vmem:[#allocation2 + $0x1c] sm:$0xf] %vm340, %v348
        %v350 = vld [vmem:[#allocation2] sm:$0xf]
        %v351 = vld [vmem:[#allocation2 + $0x4] sm:$0xf]
        %v352 = vld [vmem:[#allocation2 + $0x8] sm:$0xf]
        %v353 = vld [vmem:[#allocation2 + $0xc] sm:$0xf]
        %v354 = vld [vmem:[#allocation2 + $0x10] sm:$0xf]
        %v355 = vld [vmem:[#allocation2 + $0x14] sm:$0xf]
        %v356 = vld [vmem:[#allocation2 + $0x18] sm:$0xf]
        %v357 = vld [vmem:[%s2] sm:$0x7]
        %v358 = vld [vmem:[#allocation2 + $0x1c] sm:$0x1]
        %s359 = scalar_lea.vmem %s2, 4
        %v360 = vld [vmem:[%s359] sm:$0x7]
        %v369 = vunpack.c.l.b16 %v350
        %v370 = vunpack.c.l.b16 %v351
        %v371 = vunpack.c.l.b16 %v352
        %v372 = vunpack.c.l.b16 %v353
        %v373 = vunpack.c.l.b16 %v354
        %v374 = vunpack.c.l.b16 %v355
        %v375 = vunpack.c.l.b16 %v356
        %v376 = vunpack.c.l.b16 %v358
        %v377 = vpack.c.b16 %v370, %v369
        %v378 = vpack.c.b16 %v372, %v371
        %v379 = vpack.c.b16 %v374, %v373
        %v380 = vpack.c.b16 %v376, %v375
        %vm381 = vsmask.f32 7424
        %v383 = vshrl.u32 %v377, 16
        %v385 = vshll.u32 %v377, 16
        %v387 = vrot.slane %v385, 1
        %v388 = vor.u32 %v383, %v387
        %v390 = vshll.u32 %v378, 16
        %v392 = vrot.slane %v390, 1
        %v393 = vsel %vm381, %v388, %v392
        %v394 = vshrl.u32 %v378, 16
        %v396 = vor.u32 %v394, %v392
        %v398 = vshll.u32 %v379, 16
        %v400 = vrot.slane %v398, 1
        %v401 = vsel %vm381, %v396, %v400
        %v402 = vshrl.u32 %v379, 16
        %v404 = vor.u32 %v402, %v400
        %v406 = vshll.u32 %v380, 16
        %v408 = vrot.slane %v406, 1
        %v409 = vsel %vm381, %v404, %v408
        %v410 = vshrl.u32 %v380, 16
        %v412 = vor.u32 %v410, %v408
        %vm413 = vcmask 39936
        %v415 = vsel %vm413, %v393, 0
        %v418 = vsel %vm413, %v401, 0
        %v421 = vsel %vm413, %v409, 0
        %v424 = vsel %vm413, %v412, 0
        %vm426 = vcmask 1041408
        %vm427 = vcmask 1042432
        %v428 = vsel %vm426, 4294967295, 65535
        %v429 = vsel %vm427, %v428, 0
        %v431 = vand.u32 %v360, %v429
        %433 = vmatpush.bf16.msra.mxu0 0
        %434 = vmatpush.bf16.msra.mxu0 0
        %435 = vmatpush.bf16.msra.mxu0 0
        %436 = vmatpush.bf16.msra.mxu0 0
        %437 = vmatpush.bf16.msra.mxu0 0
        %438 = vmatpush.bf16.msra.mxu0 0
        %439 = vmatpush.bf16.msra.mxu0 0
        %440 = vmatpush.bf16.msra.mxu0 %v431
        %441 = vmatmul.bf16.gmra.mxu0 %v415
        %v442 = vpop.f32.mrf.mxu0
        %v443 = vadd.f32 0.0, %v442
        %v444 = vpop.f32.mrf.mxu0
        %v445 = vadd.f32 0.0, %v444
        %446 = vmatmul.bf16.gmra.mxu0 %v418
        %v447 = vpop.f32.mrf.mxu0
        %v448 = vadd.f32 0.0, %v447
        %v449 = vpop.f32.mrf.mxu0
        %v450 = vadd.f32 0.0, %v449
        %451 = vmatmul.bf16.gmra.mxu0 %v421
        %v452 = vpop.f32.mrf.mxu0
        %v453 = vadd.f32 0.0, %v452
        %v454 = vpop.f32.mrf.mxu0
        %v455 = vadd.f32 0.0, %v454
        %456 = vmatmul.bf16.gmra.mxu0 %v424
        %v457 = vpop.f32.mrf.mxu0
        %v458 = vadd.f32 0.0, %v457
        %v459 = vpop.f32.mrf.mxu0
        %460 = vdwg.mxu0
        %v461 = vpack.c.b16 %v375, %v375
        %v462 = vsel %vm413, %v377, 0
        %v464 = vsel %vm413, %v378, 0
        %v466 = vsel %vm413, %v379, 0
        %v469 = vsel %vm413, %v461, 0
        %v472 = vand.u32 %v357, %v429
        %474 = vmatpush.bf16.msra.mxu0 0
        %475 = vmatpush.bf16.msra.mxu0 0
        %476 = vmatpush.bf16.msra.mxu0 0
        %477 = vmatpush.bf16.msra.mxu0 0
        %478 = vmatpush.bf16.msra.mxu0 0
        %479 = vmatpush.bf16.msra.mxu0 0
        %480 = vmatpush.bf16.msra.mxu0 0
        %481 = vmatpush.bf16.msra.mxu0 %v472
        %482 = vmatmul.bf16.gmra.mxu0 %v462
        %v483 = vpop.f32.mrf.mxu0
        %v484 = vadd.f32 %v443, %v483
        %v485 = vpop.f32.mrf.mxu0
        %v486 = vadd.f32 %v445, %v485
        %487 = vmatmul.bf16.gmra.mxu0 %v464
        %v488 = vpop.f32.mrf.mxu0
        %v489 = vadd.f32 %v448, %v488
        %v490 = vpop.f32.mrf.mxu0
        %v491 = vadd.f32 %v450, %v490
        %492 = vmatmul.bf16.gmra.mxu0 %v466
        %v493 = vpop.f32.mrf.mxu0
        %v494 = vadd.f32 %v453, %v493
        %v495 = vpop.f32.mrf.mxu0
        %v496 = vadd.f32 %v455, %v495
        %497 = vmatmul.bf16.gmra.mxu0 %v469
        %v498 = vpop.f32.mrf.mxu0
        %v499 = vadd.f32 %v458, %v498
        %v500 = vpop.f32.mrf.mxu0
        %501 = vdwg.mxu0
        %v502 = vld [vmem:[%s3] sm:$0x1]
        %v504 = vperm.slane %v502, 0
        %v506 = vadd.f32 %v484, %v504
        %v507 = vadd.f32 %v486, %v504
        %v508 = vadd.f32 %v489, %v504
        %v509 = vadd.f32 %v491, %v504
        %v510 = vadd.f32 %v494, %v504
        %v511 = vadd.f32 %v496, %v504
        %v512 = vadd.f32 %v499, %v504
        %s513 = smul.u32 %s28, 56
        %v514 = vlaneseq
        %v515 = vshrl.u32 %v514, 7
        %v516 = vadd.s32 %v515, 8
        %v517 = vadd.s32 %v515, 16
        %v518 = vadd.s32 %v515, 24
        %v519 = vadd.s32 %v515, 32
        %v520 = vadd.s32 %v515, 40
        %v521 = vadd.s32 %v515, 48
        %v522 = vstv %s513
        %v523 = vadd.s32 %v522, %v515
        %v524 = vadd.s32 %v522, %v516
        %v525 = vadd.s32 %v522, %v517
        %v526 = vadd.s32 %v522, %v518
        %v527 = vadd.s32 %v522, %v519
        %v528 = vadd.s32 %v522, %v520
        %v529 = vadd.s32 %v522, %v521
        %vm530 = vcmp.lt.s32.totalorder %v523, 50
        %vm531 = vcmp.lt.s32.totalorder %v524, 50
        %vm532 = vcmp.lt.s32.totalorder %v525, 50
        %vm533 = vcmp.lt.s32.totalorder %v526, 50
        %vm534 = vcmp.lt.s32.totalorder %v527, 50
        %vm535 = vcmp.lt.s32.totalorder %v528, 50
        %vm536 = vcmp.lt.s32.totalorder %v529, 50
        %v537 = vsel %vm530, 1, 0
        %v538 = vsel %vm531, 1, 0
        %v539 = vsel %vm532, 1, 0
        %v540 = vsel %vm533, 1, 0
        %v541 = vsel %vm534, 1, 0
        %v542 = vsel %vm535, 1, 0
        %v543 = vsel %vm536, 1, 0
        %vm544 = vcmp.eq.s32.totalorder %v537, 1
        %vm545 = vcmp.eq.s32.totalorder %v538, 1
        %vm546 = vcmp.eq.s32.totalorder %v539, 1
        %vm547 = vcmp.eq.s32.totalorder %v540, 1
        %vm548 = vcmp.eq.s32.totalorder %v541, 1
        %vm549 = vcmp.eq.s32.totalorder %v542, 1
        %vm550 = vcmp.eq.s32.totalorder %v543, 1
        %v551 = vsel %vm544, %v506, 0.0
        %v552 = vsel %vm545, %v507, 0.0
        %v553 = vsel %vm546, %v508, 0.0
        %v554 = vsel %vm547, %v509, 0.0
        %v555 = vsel %vm548, %v510, 0.0
        %v556 = vsel %vm549, %v511, 0.0
        %v557 = vsel %vm550, %v512, 0.0
        %v558 = vld [vmem:[%s288] sm:$0x1]
        %vm559 = vcmask 261120
        %v560 = vsel %vm559, %v551, 0.0
        %v561 = vsel %vm559, %v552, 0.0
        %v562 = vadd.f32 %v560, %v561
        %v563 = vsel %vm559, %v553, 0.0
        %v564 = vadd.f32 %v562, %v563
        %v565 = vsel %vm559, %v554, 0.0
        %v566 = vadd.f32 %v564, %v565
        %v567 = vsel %vm559, %v555, 0.0
        %v568 = vadd.f32 %v566, %v567
        %v569 = vsel %vm559, %v556, 0.0
        %v570 = vadd.f32 %v568, %v569
        %v571 = vsel %vm559, %v557, 0.0
        %v572 = vadd.f32 %v570, %v571
        %v573 = vrot.slane %v572, 4
        %v574 = vadd.f32 %v572, %v573
        %v575 = vrot.slane %v574, 2
        %v576 = vadd.f32 %v574, %v575
        %v577 = vrot.slane %v576, 1
        %v578 = vadd.f32 %v576, %v577
        %v579 = vadd.f32 %v558, %v578
        %vm580 = vcmask 253952
        %581 = vst.msk [vmem:[%s288] sm:$0x1] %vm580, %v579
        %v582 = vld [vmem:[%s294] sm:$0x1]
        %v583 = vmul.f32 %v551, %v551
        %v584 = vmul.f32 %v552, %v552
        %v585 = vmul.f32 %v553, %v553
        %v586 = vmul.f32 %v554, %v554
        %v587 = vmul.f32 %v555, %v555
        %v588 = vmul.f32 %v556, %v556
        %v589 = vmul.f32 %v557, %v557
        %v590 = vsel %vm559, %v583, 0.0
        %v591 = vsel %vm559, %v584, 0.0
        %v592 = vadd.f32 %v590, %v591
        %v593 = vsel %vm559, %v585, 0.0
        %v594 = vadd.f32 %v592, %v593
        %v595 = vsel %vm559, %v586, 0.0
        %v596 = vadd.f32 %v594, %v595
        %v597 = vsel %vm559, %v587, 0.0
        %v598 = vadd.f32 %v596, %v597
        %v599 = vsel %vm559, %v588, 0.0
        %v600 = vadd.f32 %v598, %v599
        %v601 = vsel %vm559, %v589, 0.0
        %v602 = vadd.f32 %v600, %v601
        %v603 = vrot.slane %v602, 4
        %v604 = vadd.f32 %v602, %v603
        %v605 = vrot.slane %v604, 2
        %v606 = vadd.f32 %v604, %v605
        %v607 = vrot.slane %v606, 1
        %v608 = vadd.f32 %v606, %v607
        %v609 = vadd.f32 %v582, %v608
        %610 = vst.msk [vmem:[%s294] sm:$0x1] %vm580, %v609
        %s611 = sand.u32 %s145, 1
        %s612 = scalar_lea.sflag [#allocation4], %s611
        %s613 = sand.u32 %s145, 1
        %s614 = scalar_lea.vmem [#allocation3], %s613
        %s615 = sand.u32 %s171, 1
        %s616 = scalar_lea.sflag [#allocation6], %s615
        %s617 = sand.u32 %s171, 1
        %s618 = scalar_lea.vmem [#allocation5], %s617
        // Predicated region
        $region41: #{tpu_custom_call.1} parent=35 // pred_check
          %p619 = pneg %p155
        $region42: #{tpu_custom_call.1} parent=35 // pred_check_branch
          %621 = sbr.rel (%p619) target = $region44
        $region43: #{tpu_custom_call.1} parent=35 // pred_region
          %623 = vsyncadd %s612, 0
          %s624 = scalar_lea.hbm %s4, %s27
          %s626 = sshll.u32 %s614, 4
          %s627 = int_to_ptr.vmem [resolvable:$true] %s626
          %s628 = sshll.u32 %s624, 4
          %s629 = int_to_ptr.hbm [resolvable:$true] %s628
          %631 = dma.vmem_to_hbm [thread:$0]  %s627, 16, %s629, %s612
        $region44: #{tpu_custom_call.1} parent=35 // pred_fallthru
          _
        // Predicated region
        $region45: #{tpu_custom_call.1} parent=35 // pred_check
          %p632 = pneg %p181
        $region46: #{tpu_custom_call.1} parent=35 // pred_check_branch
          %634 = sbr.rel (%p632) target = $region48
        $region47: #{tpu_custom_call.1} parent=35 // pred_region
          %636 = vsyncadd %s616, 0
          %s637 = scalar_lea.hbm %s5, %s27
          %s639 = sshll.u32 %s618, 4
          %s640 = int_to_ptr.vmem [resolvable:$true] %s639
          %s641 = sshll.u32 %s637, 4
          %s642 = int_to_ptr.hbm [resolvable:$true] %s641
          %644 = dma.vmem_to_hbm [thread:$0]  %s640, 16, %s642, %s616
        $region48: #{tpu_custom_call.1} parent=35 // pred_fallthru
          _
      $region36: #{tpu_custom_call.1} parent=5 // pred_fallthru
        _
      %p645 = scmp.le.s32.totalorder 2, %s18
      // Predicated region
      $region49: #{tpu_custom_call.1} parent=5 // pred_check
        %p646 = pneg %p645
      $region50: #{tpu_custom_call.1} parent=5 // pred_check_branch
        %648 = sbr.rel (%p646) target = $region52
      $region51: #{tpu_custom_call.1} parent=5 // pred_region
        %s649 = ssub.s32 %s18, 2
        // Predicated region
        $region53: #{tpu_custom_call.1} parent=51 // pred_check
          %p650 = pneg %p161
        $region54: #{tpu_custom_call.1} parent=51 // pred_check_branch
          %652 = sbr.rel (%p650) target = $region56
        $region55: #{tpu_custom_call.1} parent=51 // pred_region
          %s653 = sand.u32 %s146, 1
          %s654 = scalar_lea.sflag [#allocation4], %s653
          %s655 = sand.u32 %s146, 1
          %s656 = scalar_lea.vmem [#allocation3], %s655
          %658 = dma.done %s654, 16
        $region56: #{tpu_custom_call.1} parent=51 // pred_fallthru
          _
        // Predicated region
        $region57: #{tpu_custom_call.1} parent=51 // pred_check
          %p659 = pneg %p187
        $region58: #{tpu_custom_call.1} parent=51 // pred_check_branch
          %661 = sbr.rel (%p659) target = $region60
        $region59: #{tpu_custom_call.1} parent=51 // pred_region
          %s662 = sand.u32 %s172, 1
          %s663 = scalar_lea.sflag [#allocation6], %s662
          %s664 = sand.u32 %s172, 1
          %s665 = scalar_lea.vmem [#allocation5], %s664
          %667 = dma.done %s663, 16
        $region60: #{tpu_custom_call.1} parent=51 // pred_fallthru
          _
      $region52: #{tpu_custom_call.1} parent=5 // pred_fallthru
        _
    $region6: #{tpu_custom_call.1} parent=1 // loop_footer
      %s22 = sadd.s32 1, %s18
    $region7: #{tpu_custom_call.1} parent=1 // loop_footer_branch
      %17 = sbr.rel target = $region3
    $region8: #{tpu_custom_call.1} parent=1 // loop_exit
      _
    %668 = vsyncpa [#allocation4], 1
    %s669 = scalar_lea.sflag [#allocation4], 1
    %670 = vsyncpa %s669, 1
    %671 = vsyncpa [#allocation6], 1
    %s672 = scalar_lea.sflag [#allocation6], 1
    %673 = vsyncpa %s672, 1

</llo_original>
